<compile_context>
chip_gen: v7x
topology: tpu7x:2x2x1
jax: 0.10.0
libtpu: 0.0.40
codegen_flags: <defaults>
</compile_context>

<pallas_src>
import functools

import jax
import jax.numpy as jnp
from jax import lax
from jax.experimental import pallas as pl
from jax.experimental.pallas import tpu as pltpu

_EPS = 1e-8  # matches F.cosine_similarity default
_LANE = 128


def _cos_loss_kernel(y1_ref, y2_ref, out_ref, acc_ref, *, rows, s_tile, needs_mask):
    """One (batch, spatial-row-tile) grid step.

    y1_ref, y2_ref : (1, C, s_tile, 128) VMEM tiles
    out_ref        : (1, 1, 128) per-batch partial-sum output
    acc_ref        : (s_tile, 128) f32 VMEM accumulator
    """
    t = pl.program_id(1)
    last = pl.num_programs(1) - 1

    @pl.when(t == 0)
    def _():
        acc_ref[...] = jnp.zeros_like(acc_ref)

    a = y1_ref[0].astype(jnp.float32)                 # (C, s_tile, 128)
    b = y2_ref[0].astype(jnp.float32)

    # Channel reduction over axis 0 -> full (s_tile, 128) vregs, VPU-only adds.
    dot = jnp.sum(a * b, axis=0)                      # (s_tile, 128)
    n1 = jnp.sum(a * a, axis=0)
    n2 = jnp.sum(b * b, axis=0)

    eps2 = jnp.float32(_EPS * _EPS)
    # torch: dot / (max(||a||,eps) * max(||b||,eps))
    #      = dot * rsqrt(max(n1,eps^2)) * rsqrt(max(n2,eps^2))
    cos = dot * lax.rsqrt(jnp.maximum(n1, eps2)) * lax.rsqrt(jnp.maximum(n2, eps2))

    if needs_mask:
        # Only the tail tile pays for the mask.
        @pl.when(t != last)
        def _():
            acc_ref[...] += cos

        @pl.when(t == last)
        def _():
            row = t * s_tile + lax.broadcasted_iota(jnp.int32, (s_tile, _LANE), 0)
            acc_ref[...] += jnp.where(row < rows, cos, jnp.float32(0.0))
    else:
        acc_ref[...] += cos

    @pl.when(t == last)
    def _():
        out_ref[...] = jnp.full((1, 1, _LANE), jnp.sum(acc_ref[...]), jnp.float32)


def _vmem_capacity_bytes():
    try:
        info = pltpu.get_tpu_info()
        cap = getattr(info, "vmem_capacity_bytes", None)
        if cap:
            return int(cap)
    except Exception:
        pass
    return 64 << 20  # conservative fallback: v7x per-TensorCore VMEM


def feature_orthogonal_loss(y1, y2):
    """|mean(cosine_similarity(y1, y2, dim=1, eps=1e-8))| for NCHW inputs."""
    assert y1.shape == y2.shape, "y1/y2 must have the same shape"
    B, C, H, W = y1.shape
    hw = H * W

    elt1 = jnp.dtype(y1.dtype).itemsize
    elt2 = jnp.dtype(y2.dtype).itemsize
    elt = max(elt1, elt2, 1)
    # Sublane packing of the (rows, 128) minor dims for the narrowest input dtype
    # (8 for f32, 16 for bf16, 32 for int8/fp8).
    sub = 8 * max(1, 4 // max(1, min(elt1, elt2)))

    rows = -(-hw // _LANE)          # spatial rows of 128 lanes
    hw_pad = rows * _LANE

    # Free reshape when hw % 128 == 0; otherwise pad the spatial tail with
    # zeros (zero positions contribute exactly 0 to the cosine sum).
    a = y1.reshape(B, C, hw)
    b = y2.reshape(B, C, hw)
    if hw_pad != hw:
        pad = ((0, 0), (0, 0), (0, hw_pad - hw))
        a = jnp.pad(a, pad)
        b = jnp.pad(b, pad)
    a = a.reshape(B, C, rows, _LANE)
    b = b.reshape(B, C, rows, _LANE)

    # Generation-aware tile targets.
    vmem_cap = _vmem_capacity_bytes()
    if vmem_cap >= (96 << 20):      # v5e / v6e: 128 MiB physical VMEM
        target_bytes, single_bytes = 8 << 20, 16 << 20
    else:                           # v7x (or unknown): 64 MiB per TensorCore
        target_bytes, single_bytes = 4 << 20, 6 << 20

    bytes_per_row = C * _LANE * elt  # one (C, 1, 128) slab, per input
    if rows * bytes_per_row <= single_bytes:
        # Whole spatial extent in one block: no tail mask, no per-batch
        # pipeline fill/drain, one long contiguous DMA row per channel.
        s_tile, n_t, needs_mask = rows, 1, False
    else:
        s_tile = max(sub, (target_bytes // bytes_per_row) // sub * sub)
        s_tile = min(s_tile, -(-rows // sub) * sub)
        n_t = -(-rows // s_tile)
        needs_mask = (rows % s_tile) != 0
    # TODO(synk): extremely large C (where a single C x sub x 128 block exceeds
    # VMEM) would need an additional channel-tiling/accumulation axis.

    # VMEM budget: 2 pipeline buffers x (both padded input blocks) + accumulator
    # + margin; clamp to ~85% of this generation's physical VMEM.
    s_pad = -(-s_tile // sub) * sub
    block_bytes = C * s_pad * _LANE * (elt1 + elt2)
    acc_bytes = (-(-s_tile // 8) * 8) * _LANE * 4
    needed = 2 * block_bytes + acc_bytes + (4 << 20)
    limit_cap = (vmem_cap * 85) // 100            # ~54 MiB v7x, ~108 MiB v5e/v6e
    vmem_limit = int(min(max(needed, min(32 << 20, limit_cap)), limit_cap))

    kernel = functools.partial(
        _cos_loss_kernel, rows=rows, s_tile=s_tile, needs_mask=needs_mask
    )

    partial = pl.pallas_call(
        kernel,
        out_shape=jax.ShapeDtypeStruct((B, 1, _LANE), jnp.float32),
        grid_spec=pltpu.PrefetchScalarGridSpec(
            num_scalar_prefetch=0,
            grid=(B, n_t),
            in_specs=[
                pl.BlockSpec((1, C, s_tile, _LANE), lambda bi, ti: (bi, 0, ti, 0)),
                pl.BlockSpec((1, C, s_tile, _LANE), lambda bi, ti: (bi, 0, ti, 0)),
            ],
            out_specs=pl.BlockSpec((1, 1, _LANE), lambda bi, ti: (bi, 0, 0)),
            scratch_shapes=[pltpu.VMEM((s_tile, _LANE), jnp.float32)],
        ),
        compiler_params=pltpu.CompilerParams(
            # Batch tiles are independent (megacore sharding on v7x);
            # spatial axis is the sequential reduction into the accumulator.
            dimension_semantics=("parallel", "arbitrary"),
            vmem_limit_bytes=vmem_limit,
        ),
    )(a, b)

    # Tiny epilogue in plain JAX: per-batch partial sums -> mean -> abs.
    total = jnp.sum(partial[:, 0, 0])
    return jnp.abs(total / jnp.float32(B * hw))


def _reference(y1, y2):
    # Pure-JAX mirror of torch.abs(F.cosine_similarity(y1, y2, dim=1).mean()):
    # torch clamps each norm separately at eps before dividing.
    dot = jnp.sum(y1 * y2, axis=1)
    n1 = jnp.sqrt(jnp.sum(y1 * y1, axis=1))
    n2 = jnp.sqrt(jnp.sum(y2 * y2, axis=1))
    cos = dot / (jnp.maximum(n1, _EPS) * jnp.maximum(n2, _EPS))
    return jnp.abs(jnp.mean(cos))


if __name__ == "__main__":
    key = jax.random.PRNGKey(0)
    k1, k2 = jax.random.split(key)
    B, C, H, W = 2, 4, 16, 16
    y1 = jax.random.normal(k1, (B, C, H, W), dtype=jnp.float32)
    y2 = jax.random.normal(k2, (B, C, H, W), dtype=jnp.float32)

    loss = jax.block_until_ready(feature_orthogonal_loss(y1, y2))
    ref = jax.block_until_ready(_reference(y1, y2))

    assert jnp.allclose(loss, ref, atol=1e-5, rtol=1e-5), (loss, ref)
    print("KERNEL_OK")
</pallas_src>

<mosaic_0001>
module attributes {stable_mosaic.version = 11 : i64} {
  func.func @_cos_loss_kernel(%arg0: i32, %arg1: i32, %arg2: memref<1x4x2x128xf32, #tpu.memory_space<vmem>>, %arg3: memref<1x4x2x128xf32, #tpu.memory_space<vmem>>, %arg4: memref<1x1x128xf32, #tpu.memory_space<vmem>>, %arg5: memref<2x128xf32, #tpu.memory_space<vmem>>) attributes {dimension_semantics = [#tpu.dimension_semantics<parallel>, #tpu.dimension_semantics<arbitrary>], iteration_bounds = array<i64: 2, 1>, scalar_prefetch = 0 : i64, scratch_operands = 1 : i64, tpu.core_type = #tpu.core_type<tc>, window_params = [{transform_indices = @transform_0, window_bounds = array<i64: 1, 4, 2, 128>}, {transform_indices = @transform_1, window_bounds = array<i64: 1, 4, 2, 128>}, {transform_indices = @transform_2, window_bounds = array<i64: 1, 1, 128>}]} {
    %c0_i32 = arith.constant 0 : i32
    %0 = arith.cmpi eq, %arg1, %c0_i32 : i32
    %1 = arith.extui %0 : i1 to i32
    %c0_i32_0 = arith.constant 0 : i32
    %2 = arith.cmpi ne, %1, %c0_i32_0 : i32
    scf.if %2 {
      %cst_18 = arith.constant 0.000000e+00 : f32
      %27 = vector.broadcast %cst_18 : f32 to vector<2x128xf32>
      %c0_19 = arith.constant 0 : index
      %c0_20 = arith.constant 0 : index
      %28 = vector.load %arg5[%c0_19, %c0_20] : memref<2x128xf32, #tpu.memory_space<vmem>>, vector<2x128xf32>
      tpu.vector_store %arg5[%c0_19, %c0_20], %27 {strides = array<i32>} : memref<2x128xf32, #tpu.memory_space<vmem>>, vector<2x128xf32>,
    } else {
    }
    %c0 = arith.constant 0 : index
    %c0_1 = arith.constant 0 : index
    %c0_2 = arith.constant 0 : index
    %c0_3 = arith.constant 0 : index
    %3 = vector.load %arg2[%c0, %c0_1, %c0_2, %c0_3] : memref<1x4x2x128xf32, #tpu.memory_space<vmem>>, vector<1x4x2x128xf32>
    %4 = vector.shape_cast %3 : vector<1x4x2x128xf32> to vector<4x2x128xf32>
    %c0_4 = arith.constant 0 : index
    %c0_5 = arith.constant 0 : index
    %c0_6 = arith.constant 0 : index
    %c0_7 = arith.constant 0 : index
    %5 = vector.load %arg3[%c0_4, %c0_5, %c0_6, %c0_7] : memref<1x4x2x128xf32, #tpu.memory_space<vmem>>, vector<1x4x2x128xf32>
    %6 = vector.shape_cast %5 : vector<1x4x2x128xf32> to vector<4x2x128xf32>
    %7 = arith.mulf %4, %6 : vector<4x2x128xf32>
    %cst = arith.constant dense<0.000000e+00> : vector<2x128xf32>
    %8 = vector.multi_reduction <add>, %7, %cst [0] : vector<4x2x128xf32> to vector<2x128xf32>
    %9 = arith.mulf %4, %4 : vector<4x2x128xf32>
    %cst_8 = arith.constant dense<0.000000e+00> : vector<2x128xf32>
    %10 = vector.multi_reduction <add>, %9, %cst_8 [0] : vector<4x2x128xf32> to vector<2x128xf32>
    %11 = arith.mulf %6, %6 : vector<4x2x128xf32>
    %cst_9 = arith.constant dense<0.000000e+00> : vector<2x128xf32>
    %12 = vector.multi_reduction <add>, %11, %cst_9 [0] : vector<4x2x128xf32> to vector<2x128xf32>
    %cst_10 = arith.constant 1.000000e-16 : f32
    %13 = vector.broadcast %cst_10 : f32 to vector<2x128xf32>
    %14 = arith.maximumf %10, %13 : vector<2x128xf32>
    %15 = math.rsqrt %14 : vector<2x128xf32>
    %16 = arith.mulf %8, %15 : vector<2x128xf32>
    %cst_11 = arith.constant 1.000000e-16 : f32
    %17 = vector.broadcast %cst_11 : f32 to vector<2x128xf32>
    %18 = arith.maximumf %12, %17 : vector<2x128xf32>
    %19 = math.rsqrt %18 : vector<2x128xf32>
    %20 = arith.mulf %16, %19 : vector<2x128xf32>
    %c0_12 = arith.constant 0 : index
    %c0_13 = arith.constant 0 : index
    %21 = vector.load %arg5[%c0_12, %c0_13] : memref<2x128xf32, #tpu.memory_space<vmem>>, vector<2x128xf32>
    %22 = arith.addf %21, %20 : vector<2x128xf32>
    %c0_14 = arith.constant 0 : index
    %c0_15 = arith.constant 0 : index
    %23 = vector.load %arg5[%c0_14, %c0_15] : memref<2x128xf32, #tpu.memory_space<vmem>>, vector<2x128xf32>
    tpu.vector_store %arg5[%c0_14, %c0_15], %22 {strides = array<i32>} : memref<2x128xf32, #tpu.memory_space<vmem>>, vector<2x128xf32>,
    %c0_i32_16 = arith.constant 0 : i32
    %24 = arith.cmpi eq, %arg1, %c0_i32_16 : i32
    %25 = arith.extui %24 : i1 to i32
    %c0_i32_17 = arith.constant 0 : i32
    %26 = arith.cmpi ne, %25, %c0_i32_17 : i32
    scf.if %26 {
      %c0_18 = arith.constant 0 : index
      %c0_19 = arith.constant 0 : index
      %27 = vector.load %arg5[%c0_18, %c0_19] : memref<2x128xf32, #tpu.memory_space<vmem>>, vector<2x128xf32>
      %28 = vector.shape_cast %27 : vector<2x128xf32> to vector<1x2x128xf32>
      %cst_20 = arith.constant dense<0.000000e+00> : vector<1xf32>
      %29 = vector.multi_reduction <add>, %28, %cst_20 [1, 2] : vector<1x2x128xf32> to vector<1xf32>
      %30 = vector.shape_cast %29 : vector<1xf32> to vector<1x1x1xf32>
      %31 = vector.extract %30[0, 0, 0] : f32 from vector<1x1x1xf32>
      %32 = vector.broadcast %31 : f32 to vector<1x1x128xf32>
      %c0_21 = arith.constant 0 : index
      %c0_22 = arith.constant 0 : index
      %c0_23 = arith.constant 0 : index
      %33 = vector.load %arg4[%c0_21, %c0_22, %c0_23] : memref<1x1x128xf32, #tpu.memory_space<vmem>>, vector<1x1x128xf32>
      tpu.vector_store %arg4[%c0_21, %c0_22, %c0_23], %32 {strides = array<i32>} : memref<1x1x128xf32, #tpu.memory_space<vmem>>, vector<1x1x128xf32>,
    } else {
    }
    return
  }
  func.func @transform_0(%arg0: i32, %arg1: i32) -> (i32, i32, i32, i32) {
    %c0_i32 = arith.constant 0 : i32
    %c0_i32_0 = arith.constant 0 : i32
    %c0_i32_1 = arith.constant 0 : i32
    return %arg0, %c0_i32, %arg1, %c0_i32_0 : i32, i32, i32, i32
  }
  func.func @transform_1(%arg0: i32, %arg1: i32) -> (i32, i32, i32, i32) {
    %c0_i32 = arith.constant 0 : i32
    %c0_i32_0 = arith.constant 0 : i32
    %c0_i32_1 = arith.constant 0 : i32
    return %arg0, %c0_i32, %arg1, %c0_i32_0 : i32, i32, i32, i32
  }
  func.func @transform_2(%arg0: i32, %arg1: i32) -> (i32, i32, i32) {
    %c0_i32 = arith.constant 0 : i32
    %c0_i32_0 = arith.constant 0 : i32
    %c0_i32_1 = arith.constant 0 : i32
    return %arg0, %c0_i32, %c0_i32_0 : i32, i32, i32
  }
}

</mosaic_0001>

<llo_original>
// kernel: tpu_custom_call.1
$region0: #{tpu_custom_call.1}
  #allocation0 [shape = 'u32[]', space=smem, size = 0x4, offset = 0x4, fixed_abs, tag = 'smem constant byte address 0x4 - core index']
  #allocation1 [shape = 'u32[144,128]{1,0:T(1,128)}', space=vmem, size = 0x12000, scoped, tag = 'internal scratch']
  #allocation2 [shape = 'f32[2,128]{1,0:T(2,128)}', space=vmem, size = 0x400, scoped, tag = 'scratch operand']
  %s0 = inlined_call_operand.hbm [shape: f32[2,4,2,128], index: 0, kind: input, shape index: {}]
  %s1 = inlined_call_operand.hbm [shape: f32[2,4,2,128], index: 1, kind: input, shape index: {}]
  %s2 = inlined_call_operand.hbm [shape: f32[2,1,128], index: 2, kind: output, shape index: {}]
  %s3 = sld [smem:[#allocation0]]
  $region57: #{tpu_custom_call.1} parent=0
    _
  %s5 = ssub.s32 1, %s3
  %s6 = scalar_select 0, %s5, %s3
  $region1: #{tpu_custom_call.1} parent=0
    #allocation3 [shape = 'u8[8192]{0}', space=vmem, size = 0x2000, scoped, tag = 'input window, operand 0']
    #allocation4 [shape = 's32[2]{0}', space=sflag, size = 0x8, scoped, tag = 'scoped memory for tpu_custom_call.1']
    #allocation5 [shape = 's32[2]{0}', space=sflag, size = 0x8, scoped, tag = 'scoped memory for tpu_custom_call.1']
    #allocation6 [shape = 'u8[8192]{0}', space=vmem, size = 0x2000, scoped, tag = 'input window, operand 1']
    #allocation7 [shape = 's32[2]{0}', space=sflag, size = 0x8, scoped, tag = 'scoped memory for tpu_custom_call.1']
    #allocation8 [shape = 'u8[1024]{0}', space=vmem, size = 0x400, scoped, tag = 'output window, operand 0']
    %7 = vsyncpa [#allocation4], 0
    %s8 = scalar_lea.sflag [#allocation4], 1
    %9 = vsyncpa %s8, 0
    %10 = vsyncpa [#allocation7], 0
    %s11 = scalar_lea.sflag [#allocation7], 1
    %12 = vsyncpa %s11, 0
    %13 = vsyncpa [#allocation5], 0
    %s14 = scalar_lea.sflag [#allocation5], 1
    %15 = vsyncpa %s14, 0
    loop: start=0, step=1, limit=4
    $region2: #{tpu_custom_call.1} parent=1 // loop_pre_header
      _
    $region3: #{tpu_custom_call.1} parent=1 // loop_header
      %s17 = sphi 0, %s21
      %p18 = scmp.ge.s32.totalorder %s17, 4
      %s24 = sphi 0, %s36
      %s25 = sphi 0, %s32
      %s26 = sphi 0, %s24
      %s27 = sphi 0, %s25
      %s28 = sphi 0, %s26
      %s29 = sphi 0, %s27
      %s41 = sphi 0, %s43
      %s44 = sphi 0, %s41
      %s45 = sphi 0, %s44
      %s61 = sphi 0, %s45
      %s69 = sphi 0, %s71
      %s72 = sphi 0, %s69
      %s73 = sphi 0, %s72
      %s89 = sphi 0, %s73
      %s95 = sphi 0, %s97
      %s98 = sphi 0, %s95
      %s99 = sphi 0, %s98
      %s115 = sphi 0, %s99
    $region4: #{tpu_custom_call.1} parent=1 // loop_header_branch
      %20 = sbr.rel (%p18) target = $region8
    $region5: #{tpu_custom_call.1} parent=1 // loop_body
      %s22 = ssub.s32 %s17, 1
      %s23 = ssub.s32 %s17, 2
      %s30 = sadd.s32 1, %s25
      %p31 = scmp.ge.s32.totalorder %s30, 1
      %s32 = scalar_select %p31, 0, %s30
      %s33 = sadd.s32 1, %s24
      %s34 = scalar_select %p31, %s33, %s24
      %p35 = scmp.ge.s32.totalorder %s34, 2
      %s36 = scalar_select %p35, 0, %s34
      %s37 = ssub.s32 %s24, %s36
      %s38 = ssub.s32 %s25, %s32
      %s39 = sor.u32 %s37, %s38
      %p40 = scmp.eq.s32.totalorder %s39, 0
      %s42 = sadd.s32 %s41, 1
      %s43 = scalar_select %p40, %s41, %s42
      %p46 = pneg %p40
      %p47 = scmp.eq.s32.totalorder %s17, 1
      %p48 = por %p46, %p47
      %p49 = scmp.ne.s32.totalorder %s41, %s44
      %p50 = scmp.eq.s32.totalorder %s17, 0
      %p51 = por %p49, %p50
      %p52 = scmp.ne.s32.totalorder %s41, %s44
      %p53 = scmp.eq.s32.totalorder %s22, 1
      %p54 = por %p52, %p53
      %p55 = scmp.ne.s32.totalorder %s44, %s45
      %p56 = scmp.eq.s32.totalorder %s22, 0
      %p57 = por %p55, %p56
      %p58 = scmp.ne.s32.totalorder %s44, %s45
      %p59 = scmp.eq.s32.totalorder %s23, 1
      %p60 = por %p58, %p59
      %p62 = scmp.ne.s32.totalorder %s45, %s61
      %p63 = scmp.eq.s32.totalorder %s23, 0
      %p64 = por %p62, %p63
      %s65 = ssub.s32 %s24, %s36
      %s66 = ssub.s32 %s25, %s32
      %s67 = sor.u32 %s65, %s66
      %p68 = scmp.eq.s32.totalorder %s67, 0
      %s70 = sadd.s32 %s69, 1
      %s71 = scalar_select %p68, %s69, %s70
      %p74 = pneg %p68
      %p75 = scmp.eq.s32.totalorder %s17, 1
      %p76 = por %p74, %p75
      %p77 = scmp.ne.s32.totalorder %s69, %s72
      %p78 = scmp.eq.s32.totalorder %s17, 0
      %p79 = por %p77, %p78
      %p80 = scmp.ne.s32.totalorder %s69, %s72
      %p81 = scmp.eq.s32.totalorder %s22, 1
      %p82 = por %p80, %p81
      %p83 = scmp.ne.s32.totalorder %s72, %s73
      %p84 = scmp.eq.s32.totalorder %s22, 0
      %p85 = por %p83, %p84
      %p86 = scmp.ne.s32.totalorder %s72, %s73
      %p87 = scmp.eq.s32.totalorder %s23, 1
      %p88 = por %p86, %p87
      %p90 = scmp.ne.s32.totalorder %s73, %s89
      %p91 = scmp.eq.s32.totalorder %s23, 0
      %p92 = por %p90, %p91
      %s93 = ssub.s32 %s24, %s36
      %p94 = scmp.eq.s32.totalorder %s93, 0
      %s96 = sadd.s32 %s95, 1
      %s97 = scalar_select %p94, %s95, %s96
      %p100 = pneg %p94
      %p101 = scmp.eq.s32.totalorder %s17, 1
      %p102 = por %p100, %p101
      %p103 = scmp.ne.s32.totalorder %s95, %s98
      %p104 = scmp.eq.s32.totalorder %s17, 0
      %p105 = por %p103, %p104
      %p106 = scmp.ne.s32.totalorder %s95, %s98
      %p107 = scmp.eq.s32.totalorder %s22, 1
      %p108 = por %p106, %p107
      %p109 = scmp.ne.s32.totalorder %s98, %s99
      %p110 = scmp.eq.s32.totalorder %s22, 0
      %p111 = por %p109, %p110
      %p112 = scmp.ne.s32.totalorder %s98, %s99
      %p113 = scmp.eq.s32.totalorder %s23, 1
      %p114 = por %p112, %p113
      %p116 = scmp.ne.s32.totalorder %s99, %s115
      %p117 = scmp.eq.s32.totalorder %s23, 0
      %p118 = por %p116, %p117
      %p119 = scmp.le.s32.totalorder 1, %s17
      %p120 = scmp.lt.s32.totalorder %s17, 3
      %p121 = pnand %p119, %p120
      %p122 = pneg %p121
      // Predicated region
      $region9: #{tpu_custom_call.1} parent=5 // pred_check
        _
      $region10: #{tpu_custom_call.1} parent=5 // pred_check_branch
        %124 = sbr.rel (%p121) target = $region12
      $region11: #{tpu_custom_call.1} parent=5 // pred_region
        %s125 = ssub.s32 %s17, 1
      $region12: #{tpu_custom_call.1} parent=5 // pred_fallthru
        _
      %p126 = scmp.lt.s32.totalorder %s17, 2
      // Predicated region
      $region13: #{tpu_custom_call.1} parent=5 // pred_check
        %p127 = pneg %p126
      $region14: #{tpu_custom_call.1} parent=5 // pred_check_branch
        %129 = sbr.rel (%p127) target = $region16
      $region15: #{tpu_custom_call.1} parent=5 // pred_region
        // Predicated region
        $region17: #{tpu_custom_call.1} parent=15 // pred_check
          %p130 = pneg %p51
        $region18: #{tpu_custom_call.1} parent=15 // pred_check_branch
          %132 = sbr.rel (%p130) target = $region20
        $region19: #{tpu_custom_call.1} parent=15 // pred_region
          %s133 = sand.u32 %s41, 1
          %s134 = scalar_lea.sflag [#allocation4], %s133
          %s135 = sand.u32 %s41, 1
          %s136 = smul.addr %s135, 8
          %s137 = scalar_lea.vmem [#allocation3], %s136
          %s139 = ssub.s32 128, 128
          %140 = vsyncadd %s134, %s139
          %s141 = smul.addr %s24, 4
          %s142 = sadd.s32 %s25, %s141
          %s143 = smul.addr %s142, 32
          %s144 = scalar_lea.hbm %s0, %s143
          %s145 = sshll.u32 %s137, 4
          %s146 = int_to_ptr.vmem [resolvable:$true] %s145
          %151 = dma.hbm_to_vmem [thread:$0]  %s144, 128, %s146, %s134, 32, 32, 2
        $region20: #{tpu_custom_call.1} parent=15 // pred_fallthru
          _
        // Predicated region
        $region21: #{tpu_custom_call.1} parent=15 // pred_check
          %p152 = pneg %p79
        $region22: #{tpu_custom_call.1} parent=15 // pred_check_branch
          %154 = sbr.rel (%p152) target = $region24
        $region23: #{tpu_custom_call.1} parent=15 // pred_region
          %s155 = sand.u32 %s69, 1
          %s156 = scalar_lea.sflag [#allocation7], %s155
          %s157 = sand.u32 %s69, 1
          %s158 = smul.addr %s157, 8
          %s159 = scalar_lea.vmem [#allocation6], %s158
          %s161 = ssub.s32 128, 128
          %162 = vsyncadd %s156, %s161
          %s163 = smul.addr %s24, 4
          %s164 = sadd.s32 %s25, %s163
          %s165 = smul.addr %s164, 32
          %s166 = scalar_lea.hbm %s1, %s165
          %s167 = sshll.u32 %s159, 4
          %s168 = int_to_ptr.vmem [resolvable:$true] %s167
          %173 = dma.hbm_to_vmem [thread:$0]  %s166, 128, %s168, %s156, 32, 32, 2
        $region24: #{tpu_custom_call.1} parent=15 // pred_fallthru
          _
      $region16: #{tpu_custom_call.1} parent=5 // pred_fallthru
        _
      %p174 = scmp.le.s32.totalorder 1, %s17
      %p175 = scmp.lt.s32.totalorder %s17, 3
      %p176 = pnand %p174, %p175
      %p177 = pneg %p176
      // Predicated region
      $region25: #{tpu_custom_call.1} parent=5 // pred_check
        _
      $region26: #{tpu_custom_call.1} parent=5 // pred_check_branch
        %179 = sbr.rel (%p176) target = $region28
      $region27: #{tpu_custom_call.1} parent=5 // pred_region
        %s180 = ssub.s32 %s17, 1
        %s181 = sand.u32 %s44, 1
        %s182 = scalar_lea.sflag [#allocation4], %s181
        %s183 = sand.u32 %s44, 1
        %s184 = smul.addr %s183, 8
        %s185 = scalar_lea.vmem [#allocation3], %s184
        // Predicated region
        $region29: #{tpu_custom_call.1} parent=27 // pred_check
          %p186 = pneg %p57
        $region30: #{tpu_custom_call.1} parent=27 // pred_check_branch
          %188 = sbr.rel (%p186) target = $region32
        $region31: #{tpu_custom_call.1} parent=27 // pred_region
          %189 = dma.done %s182, 128
        $region32: #{tpu_custom_call.1} parent=27 // pred_fallthru
          _
        %s190 = sand.u32 %s72, 1
        %s191 = scalar_lea.sflag [#allocation7], %s190
        %s192 = sand.u32 %s72, 1
        %s193 = smul.addr %s192, 8
        %s194 = scalar_lea.vmem [#allocation6], %s193
        // Predicated region
        $region33: #{tpu_custom_call.1} parent=27 // pred_check
          %p195 = pneg %p85
        $region34: #{tpu_custom_call.1} parent=27 // pred_check_branch
          %197 = sbr.rel (%p195) target = $region36
        $region35: #{tpu_custom_call.1} parent=27 // pred_region
          %198 = dma.done %s191, 128
        $region36: #{tpu_custom_call.1} parent=27 // pred_fallthru
          _
        %s199 = sand.u32 %s44, 1
        %s200 = scalar_lea.sflag [#allocation4], %s199
        %s201 = sand.u32 %s44, 1
        %s202 = smul.addr %s201, 8
        %s203 = scalar_lea.vmem [#allocation3], %s202
        %p204 = pneg %p57
        %p205 = pneg %p54
        %s206 = sand.u32 %s72, 1
        %s207 = scalar_lea.sflag [#allocation7], %s206
        %s208 = sand.u32 %s72, 1
        %s209 = smul.addr %s208, 8
        %s210 = scalar_lea.vmem [#allocation6], %s209
        %p211 = pneg %p85
        %p212 = pneg %p82
        %p213 = pneg %p111
        %p214 = pneg %p108
        %s215 = sand.u32 %s98, 1
        %s216 = scalar_lea.sflag [#allocation5], %s215
        %s217 = sand.u32 %s98, 1
        %s218 = scalar_lea.vmem [#allocation8], %s217
        %p219 = scmp.eq.s32.totalorder %s27, 0
        // Predicated region
        $region37: #{tpu_custom_call.1} parent=27 // pred_check
          %p220 = pneg %p219
        $region38: #{tpu_custom_call.1} parent=27 // pred_check_branch
          %222 = sbr.rel (%p220) target = $region40
        $region39: #{tpu_custom_call.1} parent=27 // pred_region
          %223 = vst [vmem:[#allocation2] sm:$0x3] 0.0
        $region40: #{tpu_custom_call.1} parent=27 // pred_fallthru
          _
        %v224 = vld [vmem:[%s185] sm:$0x3]
        %v225 = vld [vmem:[%s185 + $0x2] sm:$0x3]
        %v226 = vld [vmem:[%s185 + $0x4] sm:$0x3]
        %v227 = vld [vmem:[%s185 + $0x6] sm:$0x3]
        %v228 = vld [vmem:[%s194] sm:$0x3]
        %v229 = vld [vmem:[%s194 + $0x2] sm:$0x3]
        %v230 = vld [vmem:[%s194 + $0x4] sm:$0x3]
        %v231 = vld [vmem:[%s194 + $0x6] sm:$0x3]
        %v232 = vmul.f32 %v224, %v228
        %v233 = vmul.f32 %v225, %v229
        %v234 = vmul.f32 %v226, %v230
        %v235 = vmul.f32 %v227, %v231
        %vm236 = vcmask 1041408
        %v237 = vsel %vm236, %v232, 0.0
        %v238 = vsel %vm236, %v233, 0.0
        %v239 = vadd.f32 %v237, %v238
        %v240 = vsel %vm236, %v234, 0.0
        %v241 = vadd.f32 %v239, %v240
        %v242 = vsel %vm236, %v235, 0.0
        %v243 = vadd.f32 %v241, %v242
        %v244 = vmul.f32 %v224, %v224
        %v245 = vmul.f32 %v225, %v225
        %v246 = vmul.f32 %v226, %v226
        %v247 = vmul.f32 %v227, %v227
        %v248 = vsel %vm236, %v244, 0.0
        %v249 = vsel %vm236, %v245, 0.0
        %v250 = vadd.f32 %v248, %v249
        %v251 = vsel %vm236, %v246, 0.0
        %v252 = vadd.f32 %v250, %v251
        %v253 = vsel %vm236, %v247, 0.0
        %v254 = vadd.f32 %v252, %v253
        %v255 = vmul.f32 %v228, %v228
        %v256 = vmul.f32 %v229, %v229
        %v257 = vmul.f32 %v230, %v230
        %v258 = vmul.f32 %v231, %v231
        %v259 = vsel %vm236, %v255, 0.0
        %v260 = vsel %vm236, %v256, 0.0
        %v261 = vadd.f32 %v259, %v260
        %v262 = vsel %vm236, %v257, 0.0
        %v263 = vadd.f32 %v261, %v262
        %v264 = vsel %vm236, %v258, 0.0
        %v265 = vadd.f32 %v263, %v264
        %v266 = vmax.f32 %v254, 1e-16
        %v267 = vrsqrt.pop %v266
        %v268 = vmul.f32 %v243, %v267
        %v269 = vmax.f32 %v265, 1e-16
        %v270 = vrsqrt.pop %v269
        %v271 = vmul.f32 %v268, %v270
        %v272 = vld [vmem:[#allocation2] sm:$0x3]
        %v273 = vadd.f32 %v272, %v271
        %274 = vst [vmem:[#allocation2] sm:$0x3] %v273
        // Predicated region
        $region41: #{tpu_custom_call.1} parent=27 // pred_check
          %p275 = pneg %p219
        $region42: #{tpu_custom_call.1} parent=27 // pred_check_branch
          %277 = sbr.rel (%p275) target = $region44
        $region43: #{tpu_custom_call.1} parent=27 // pred_region
          %v278 = vld [vmem:[#allocation2] sm:$0x3]
          %v279 = vsel %vm236, %v278, 0.0
          %280 = vadd.xlane.f32.xlu0 %v279
          %v281 = vpop.xlane.xlu0 %280
          %v282 = vrot.slane %v281, 4
          %v283 = vadd.f32 %v281, %v282
          %v284 = vrot.slane %v283, 2
          %v285 = vadd.f32 %v283, %v284
          %v286 = vrot.slane %v285, 1
          %v287 = vadd.f32 %v285, %v286
          %s288 = vtos %v287
          %v289 = vstv %s288
          %290 = vst [vmem:[%s218] sm:$0x1] %v289
        $region44: #{tpu_custom_call.1} parent=27 // pred_fallthru
          _
        %s291 = sand.u32 %s98, 1
        %s292 = scalar_lea.sflag [#allocation5], %s291
        %s293 = sand.u32 %s98, 1
        %s294 = scalar_lea.vmem [#allocation8], %s293
        // Predicated region
        $region45: #{tpu_custom_call.1} parent=27 // pred_check
          %p295 = pneg %p108
        $region46: #{tpu_custom_call.1} parent=27 // pred_check_branch
          %297 = sbr.rel (%p295) target = $region48
        $region47: #{tpu_custom_call.1} parent=27 // pred_region
          %s299 = ssub.s32 16, 16
          %300 = vsyncadd %s292, %s299
          %s301 = smul.addr %s26, 16
          %s302 = scalar_lea.hbm %s2, %s301
          %s304 = sshll.u32 %s294, 4
          %s305 = int_to_ptr.vmem [resolvable:$true] %s304
          %307 = dma.vmem_to_hbm [thread:$0]  %s305, 16, %s302, %s292
        $region48: #{tpu_custom_call.1} parent=27 // pred_fallthru
          _
      $region28: #{tpu_custom_call.1} parent=5 // pred_fallthru
        _
      %p308 = scmp.le.s32.totalorder 2, %s17
      // Predicated region
      $region49: #{tpu_custom_call.1} parent=5 // pred_check
        %p309 = pneg %p308
      $region50: #{tpu_custom_call.1} parent=5 // pred_check_branch
        %311 = sbr.rel (%p309) target = $region52
      $region51: #{tpu_custom_call.1} parent=5 // pred_region
        %s312 = ssub.s32 %s17, 2
        // Predicated region
        $region53: #{tpu_custom_call.1} parent=51 // pred_check
          %p313 = pneg %p114
        $region54: #{tpu_custom_call.1} parent=51 // pred_check_branch
          %315 = sbr.rel (%p313) target = $region56
        $region55: #{tpu_custom_call.1} parent=51 // pred_region
          %s316 = sand.u32 %s99, 1
          %s317 = scalar_lea.sflag [#allocation5], %s316
          %s318 = sand.u32 %s99, 1
          %s319 = scalar_lea.vmem [#allocation8], %s318
          %320 = dma.done %s317, 16
        $region56: #{tpu_custom_call.1} parent=51 // pred_fallthru
          _
      $region52: #{tpu_custom_call.1} parent=5 // pred_fallthru
        _
    $region6: #{tpu_custom_call.1} parent=1 // loop_footer
      %s21 = sadd.s32 1, %s17
    $region7: #{tpu_custom_call.1} parent=1 // loop_footer_branch
      %16 = sbr.rel target = $region3
    $region8: #{tpu_custom_call.1} parent=1 // loop_exit
      _
    %321 = vsyncpa [#allocation4], 1
    %s322 = scalar_lea.sflag [#allocation4], 1
    %323 = vsyncpa %s322, 1
    %324 = vsyncpa [#allocation7], 1
    %s325 = scalar_lea.sflag [#allocation7], 1
    %326 = vsyncpa %s325, 1
    %327 = vsyncpa [#allocation5], 1
    %s328 = scalar_lea.sflag [#allocation5], 1
    %329 = vsyncpa %s328, 1

</llo_original>
